<compile_context>
chip_gen: v6e
topology: v6e:2x2x1
jax: 0.10.0
libtpu: 0.0.40
codegen_flags: <defaults>
</compile_context>

<pallas_src>
import functools
import math

import jax
import jax.numpy as jnp
from jax.experimental import pallas as pl
from jax.experimental.pallas import tpu as pltpu

_LANE = 128
_SUBLANE = 8
_MIN_PALLAS_BYTES = 1 << 20  # below this, launch/pipeline overhead dominates


def _natural_kernel(x_ref, pos_ref, o_ref, *, scale, acc_dtype):
    # x_ref: (tb, tl, D), pos_ref: (tl, D) -> broadcast over the batch tile.
    x = x_ref[...].astype(acc_dtype)
    p = pos_ref[...].astype(acc_dtype)
    o_ref[...] = (x * jnp.asarray(scale, acc_dtype) + p[None, :, :]).astype(o_ref.dtype)


def _flat_kernel(x_ref, pos_ref, o_ref, *, scale, acc_dtype):
    # x_ref: (tb, tc), pos_ref: (1, tc) -> cheap sublane broadcast.
    x = x_ref[...].astype(acc_dtype)
    p = pos_ref[...].astype(acc_dtype)
    o_ref[...] = (x * jnp.asarray(scale, acc_dtype) + p).astype(o_ref.dtype)


def _vmem_plan():
    """(target_block_bytes, vmem_limit_bytes), sized against the limit we request."""
    try:
        phys = int(pltpu.get_tpu_info().vmem_capacity_bytes)
    except Exception:  # no TPU info: assume the smallest generation (v7x per-TC)
        phys = 64 * 1024 * 1024
    if phys >= 128 * 1024 * 1024:          # v5e / v6e
        vmem_limit = 64 * 1024 * 1024
        target_block = 8 * 1024 * 1024
    else:                                  # v7x: 64 MiB physical, keep scratch headroom
        vmem_limit = 48 * 1024 * 1024
        target_block = 4 * 1024 * 1024
    # Live set: x (2 bufs) + out (2 bufs) + pos (<= 2 bufs) -> <= 6 resident blocks.
    return min(target_block, vmem_limit // 8), vmem_limit


def _encode_natural(x, pos_weight, scale, out_dtype):
    """(B, L, D) layout, D lane-aligned; sequence (+ batch) tiled with a cdiv grid."""
    B, L, D = x.shape
    itemsize = x.dtype.itemsize
    target_block, vmem_limit = _vmem_plan()
    total_bytes = B * L * D * itemsize
    # Cap at total/2 so there are always >= 2 grid steps (work for both v7x TCs),
    # but never below one (8, D) row-group.
    target_block = max(min(target_block, total_bytes // 2), _SUBLANE * D * itemsize)

    rows_budget = target_block // (D * itemsize)
    if rows_budget >= L:
        tl = L                                           # pos table fully VMEM-resident
        tb = max(min(B, target_block // (L * D * itemsize)), 1)
    else:
        tl = max((rows_budget // _SUBLANE) * _SUBLANE, _SUBLANE)
        tb = 1
    grid = (pl.cdiv(L, tl), pl.cdiv(B, tb))              # batch innermost -> pos stays put

    kernel = functools.partial(_natural_kernel, scale=scale, acc_dtype=out_dtype)
    flops = 2 * B * L * D
    bytes_accessed = (B * L * D * (itemsize + jnp.dtype(out_dtype).itemsize)
                      + L * D * pos_weight.dtype.itemsize)

    call_kwargs = {}
    if out_dtype == x.dtype:
        call_kwargs["input_output_aliases"] = {0: 0}     # in-place elementwise

    return pl.pallas_call(
        kernel,
        out_shape=jax.ShapeDtypeStruct((B, L, D), out_dtype),
        grid_spec=pltpu.PrefetchScalarGridSpec(
            num_scalar_prefetch=0,
            grid=grid,
            in_specs=[
                pl.BlockSpec((tb, tl, D), lambda l, b: (b, l, 0)),
                pl.BlockSpec((tl, D), lambda l, b: (l, 0)),
            ],
            out_specs=pl.BlockSpec((tb, tl, D), lambda l, b: (b, l, 0)),
        ),
        compiler_params=pltpu.CompilerParams(
            dimension_semantics=("parallel", "parallel"),
            vmem_limit_bytes=vmem_limit,
        ),
        cost_estimate=pl.CostEstimate(
            flops=flops, transcendentals=0, bytes_accessed=bytes_accessed
        ),
        **call_kwargs,
    )(x, pos_weight)


def _encode_flat(x, pos_weight, scale, out_dtype):
    """Lane-dense layout for D % 128 != 0: fold (L, D) -> L*D; tile batch and columns."""
    B, L, D = x.shape
    flat = L * D
    itemsize = x.dtype.itemsize
    x2 = x.reshape(B, flat)
    pos2 = pos_weight.reshape(1, flat)

    target_block, vmem_limit = _vmem_plan()
    total_bytes = B * flat * itemsize
    target_block = max(min(target_block, total_bytes // 2),
                       _SUBLANE * _LANE * itemsize)

    rb = min(B, _SUBLANE)
    cols_budget = target_block // (rb * itemsize)
    if cols_budget >= flat:
        tc = flat                                        # full extent is always legal
    else:
        tc = max((cols_budget // _LANE) * _LANE, _LANE)
    rows_budget = target_block // (tc * itemsize)
    if rows_budget >= B or B <= _SUBLANE:
        tb = B
    else:
        tb = max((rows_budget // _SUBLANE) * _SUBLANE, _SUBLANE)
    grid = (pl.cdiv(flat, tc), pl.cdiv(B, tb))           # batch innermost -> pos stays put

    kernel = functools.partial(_flat_kernel, scale=scale, acc_dtype=out_dtype)
    flops = 2 * B * flat
    bytes_accessed = (B * flat * (itemsize + jnp.dtype(out_dtype).itemsize)
                      + flat * pos_weight.dtype.itemsize)

    call_kwargs = {}
    if out_dtype == x.dtype:
        call_kwargs["input_output_aliases"] = {0: 0}

    y2 = pl.pallas_call(
        kernel,
        out_shape=jax.ShapeDtypeStruct((B, flat), out_dtype),
        grid_spec=pltpu.PrefetchScalarGridSpec(
            num_scalar_prefetch=0,
            grid=grid,
            in_specs=[
                pl.BlockSpec((tb, tc), lambda c, b: (b, c)),
                pl.BlockSpec((1, tc), lambda c, b: (0, c)),
            ],
            out_specs=pl.BlockSpec((tb, tc), lambda c, b: (b, c)),
        ),
        compiler_params=pltpu.CompilerParams(
            dimension_semantics=("parallel", "parallel"),
            vmem_limit_bytes=vmem_limit,
        ),
        cost_estimate=pl.CostEstimate(
            flops=flops, transcendentals=0, bytes_accessed=bytes_accessed
        ),
        **call_kwargs,
    )(x2, pos2)
    return y2.reshape(B, L, D)


def learnable_position_encode(x: jax.Array, pos_weight: jax.Array, *,
                              force_pallas: bool = False) -> jax.Array:
    """Forward of LearnablePositionEncoder (dropout p=0): x * sqrt(D) + pos_weight."""
    B, L, D = x.shape
    assert pos_weight.shape == (L, D)
    scale = math.sqrt(D)
    out_dtype = jnp.promote_types(x.dtype, pos_weight.dtype)

    total_bytes = B * L * D * x.dtype.itemsize
    if not force_pallas and total_bytes < _MIN_PALLAS_BYTES:
        # Tiny inputs: custom-call launch + pipeline prologue dominates; a fused
        # XLA elementwise op is strictly faster than any Pallas kernel here.
        return (x.astype(out_dtype) * jnp.asarray(scale, out_dtype)
                + pos_weight[None, :, :].astype(out_dtype))

    if D % _LANE == 0:
        return _encode_natural(x, pos_weight, scale, out_dtype)
    # d_model not lane-aligned: lane-dense folded layout avoids masked vst.msk
    # partial stores on every tile (biggest measured lever for mem-bound kernels).
    return _encode_flat(x, pos_weight, scale, out_dtype)


if __name__ == "__main__":
    key = jax.random.PRNGKey(0)

    def ref(x, w):
        return x * math.sqrt(x.shape[-1]) + w[None, :, :]

    def check(name, x, w, force=False):
        y = jax.block_until_ready(learnable_position_encode(x, w, force_pallas=force))
        y_ref = ref(x, w)
        assert y.shape == y_ref.shape, name
        assert jnp.allclose(y, y_ref, atol=1e-5, rtol=1e-5), f"mismatch: {name}"

    # 1) Module defaults (d_model=32, max_len=5, batch=2): tiny -> fused-jnp bypass.
    k1, k2, key = jax.random.split(key, 3)
    x = jax.random.normal(k1, (2, 5, 32), dtype=jnp.float32)
    w = jax.random.normal(k2, (5, 32), dtype=jnp.float32)
    check("defaults/bypass", x, w)

    # 2) Same shapes forced through the Pallas lane-dense flat path.
    check("defaults/flat", x, w, force=True)

    # 3) Flat path with batch tiling and masked boundary blocks (B=12 -> tb=8).
    k1, k2, key = jax.random.split(key, 3)
    x = jax.random.normal(k1, (12, 64, 96), dtype=jnp.float32)
    w = jax.random.normal(k2, (64, 96), dtype=jnp.float32)
    check("flat/tiled", x, w, force=True)

    # 4) Natural lane-aligned path, auto-dispatched (>= 1 MiB), pos fully resident,
    #    >= 2 grid steps for v7x's two TensorCores.
    k1, k2, key = jax.random.split(key, 3)
    x = jax.random.normal(k1, (2, 1024, 256), dtype=jnp.float32)
    w = jax.random.normal(k2, (1024, 256), dtype=jnp.float32)
    check("natural/resident-pos", x, w)

    # 5) Natural path with cdiv sequence tiling and a partial boundary block (L=1000).
    k1, k2, key = jax.random.split(key, 3)
    x = jax.random.normal(k1, (1, 1000, 128), dtype=jnp.float32)
    w = jax.random.normal(k2, (1000, 128), dtype=jnp.float32)
    check("natural/seq-tiled", x, w, force=True)

    # TODO(synk): dropout with p > 0 would need pltpu.prng_seed/prng_random_bits
    # seeded per grid step; the module default p=0 makes the forward exact as-is.
    print("KERNEL_OK")
</pallas_src>

<mosaic_0001>
module attributes {stable_mosaic.version = 11 : i64} {
  func.func @_flat_kernel(%arg0: i32, %arg1: i32, %arg2: memref<2x160xf32, #tpu.memory_space<vmem>>, %arg3: memref<1x160xf32, #tpu.memory_space<vmem>>, %arg4: memref<2x160xf32, #tpu.memory_space<vmem>>) attributes {dimension_semantics = [#tpu.dimension_semantics<parallel>, #tpu.dimension_semantics<parallel>], iteration_bounds = array<i64: 1, 1>, scalar_prefetch = 0 : i64, scratch_operands = 0 : i64, tpu.core_type = #tpu.core_type<tc>, window_params = [{transform_indices = @transform_0, window_bounds = array<i64: 2, 160>}, {transform_indices = @transform_1, window_bounds = array<i64: 1, 160>}, {transform_indices = @transform_2, window_bounds = array<i64: 2, 160>}]} {
    %c0 = arith.constant 0 : index
    %c0_0 = arith.constant 0 : index
    %0 = vector.load %arg2[%c0, %c0_0] : memref<2x160xf32, #tpu.memory_space<vmem>>, vector<2x160xf32>
    %c0_1 = arith.constant 0 : index
    %c0_2 = arith.constant 0 : index
    %1 = vector.load %arg3[%c0_1, %c0_2] : memref<1x160xf32, #tpu.memory_space<vmem>>, vector<1x160xf32>
    %cst = arith.constant 5.65685415 : f32
    %2 = vector.broadcast %cst : f32 to vector<2x160xf32>
    %3 = arith.mulf %0, %2 : vector<2x160xf32>
    %4 = vector.broadcast %1 : vector<1x160xf32> to vector<2x160xf32>
    %5 = arith.addf %3, %4 : vector<2x160xf32>
    %c0_3 = arith.constant 0 : index
    %c0_4 = arith.constant 0 : index
    %6 = vector.load %arg4[%c0_3, %c0_4] : memref<2x160xf32, #tpu.memory_space<vmem>>, vector<2x160xf32>
    tpu.vector_store %arg4[%c0_3, %c0_4], %5 {strides = array<i32>} : memref<2x160xf32, #tpu.memory_space<vmem>>, vector<2x160xf32>,
    return
  }
  func.func @transform_0(%arg0: i32, %arg1: i32) -> (i32, i32) {
    %c0_i32 = arith.constant 0 : i32
    return %arg1, %arg0 : i32, i32
  }
  func.func @transform_1(%arg0: i32, %arg1: i32) -> (i32, i32) {
    %c0_i32 = arith.constant 0 : i32
    %c0_i32_0 = arith.constant 0 : i32
    return %c0_i32, %arg0 : i32, i32
  }
  func.func @transform_2(%arg0: i32, %arg1: i32) -> (i32, i32) {
    %c0_i32 = arith.constant 0 : i32
    return %arg1, %arg0 : i32, i32
  }
}

</mosaic_0001>

<llo_original>
// kernel: tpu_custom_call.1
$region0: #{tpu_custom_call.1}
  #allocation0 [shape = 'u32[]', space=smem, size = 0x4, offset = 0x4, fixed_abs, tag = 'smem constant byte address 0x4 - core index']
  #allocation1 [shape = 'u32[144,128]{1,0:T(1,128)}', space=vmem, size = 0x12000, scoped, tag = 'internal scratch']
  %s0 = inlined_call_operand.hbm [shape: f32[2,160], index: 0, kind: input, shape index: {}, may-alias: {0,2}]
  %s1 = inlined_call_operand.vmem [shape: f32[1,160], index: 1, kind: input, shape index: {}]
  %s2 = inlined_call_operand.hbm [shape: f32[2,160], index: 2, kind: output, shape index: {}, may-alias: {0,2}]
  %s3 = sld [smem:[#allocation0]]
  $region22: #{tpu_custom_call.1} parent=0
    _
  %s5 = ssub.s32 1, %s3
  %s6 = scalar_select 0, %s5, %s3
  $region1: #{tpu_custom_call.1} parent=0
    #allocation2 [shape = 'u8[2048]{0}', space=vmem, size = 0x800, scoped, tag = 'input window, operand 0, single buffered']
    #allocation3 [shape = 's32[1]{0}', space=sflag, size = 0x4, scoped, tag = 'scoped memory for tpu_custom_call.1']
    #allocation4 [shape = 's32[1]{0}', space=sflag, size = 0x4, scoped, tag = 'scoped memory for tpu_custom_call.1']
    #allocation5 [shape = 'u8[2048]{0}', space=vmem, size = 0x800, scoped, tag = 'output window, operand 0, single buffered']
    %7 = vsyncpa [#allocation3], 0
    %8 = vsyncpa [#allocation4], 0
    // Predicated region
    $region2: #{tpu_custom_call.1} parent=1 // pred_check
      _
    $region3: #{tpu_custom_call.1} parent=1 // pred_check_branch
      %10 = sbr.rel (0) target = $region5
    $region4: #{tpu_custom_call.1} parent=1 // pred_region
      %s12 = ssub.s32 64, 64
      %13 = vsyncadd [#allocation3], %s12
      %s15 = sshll.u32 [#allocation2], 4
      %s16 = int_to_ptr.vmem [resolvable:$true] %s15
      %18 = dma.hbm_to_vmem [thread:$0]  %s0, 64, %s16, [#allocation3]
    $region5: #{tpu_custom_call.1} parent=1 // pred_fallthru
      _
    // Predicated region
    $region6: #{tpu_custom_call.1} parent=1 // pred_check
      _
    $region7: #{tpu_custom_call.1} parent=1 // pred_check_branch
      %20 = sbr.rel (0) target = $region9
    $region8: #{tpu_custom_call.1} parent=1 // pred_region
      _
    $region9: #{tpu_custom_call.1} parent=1 // pred_fallthru
      _
    // Predicated region
    $region10: #{tpu_custom_call.1} parent=1 // pred_check
      _
    $region11: #{tpu_custom_call.1} parent=1 // pred_check_branch
      %22 = sbr.rel (0) target = $region13
    $region12: #{tpu_custom_call.1} parent=1 // pred_region
      %23 = dma.done [#allocation3], 64
    $region13: #{tpu_custom_call.1} parent=1 // pred_fallthru
      _
    %v24 = vld [vmem:[#allocation2] sm:$0xf]
    %v25 = vld [vmem:[%s1] sm:$0x3]
    %v26 = vmul.f32 %v24, 5.656854
    %v28 = vlaneseq
    %v29 = vshrl.u32 %v28, 7
    %v30 = vsub.s32 0, %v29
    %v31 = vrot.slane %v25, %v30
    %v32 = vlaneseq
    %v33 = vshrl.u32 %v32, 7
    %v34 = vsub.s32 1, %v33
    %v35 = vrot.slane %v25, %v34
    %v36 = vcombine.low %v31, %v35
    %v38 = vunpack.c.l.s4 1983009808
    %v39 = vunpack.c.0.s8 %v38
    %v40 = vlaneseq
    %v41 = vshrl.u32 %v40, 7
    %v42 = vsub.s32 %v39, %v41
    %v43 = vrot.slane %v36, %v42
    %v45 = vadd.f32 %v26, %v43
    %vm46 = vcmask 1041408
    %vm47 = vcmask 257026
    %vm48 = vmor %vm47, %vm46
    %49 = vst.msk [vmem:[#allocation5] sm:$0xf] %vm48, %v45
    // Predicated region
    $region14: #{tpu_custom_call.1} parent=1 // pred_check
      _
    $region15: #{tpu_custom_call.1} parent=1 // pred_check_branch
      %51 = sbr.rel (0) target = $region17
    $region16: #{tpu_custom_call.1} parent=1 // pred_region
      %s53 = ssub.s32 64, 64
      %54 = vsyncadd [#allocation4], %s53
      %s56 = sshll.u32 [#allocation5], 4
      %s57 = int_to_ptr.vmem [resolvable:$true] %s56
      %59 = dma.vmem_to_hbm [thread:$0]  %s57, 64, %s2, [#allocation4]
    $region17: #{tpu_custom_call.1} parent=1 // pred_fallthru
      _
    // Predicated region
    $region18: #{tpu_custom_call.1} parent=1 // pred_check
      _
    $region19: #{tpu_custom_call.1} parent=1 // pred_check_branch
      %61 = sbr.rel (0) target = $region21
    $region20: #{tpu_custom_call.1} parent=1 // pred_region
      %62 = dma.done [#allocation4], 64
    $region21: #{tpu_custom_call.1} parent=1 // pred_fallthru
      _
    %63 = vsyncpa [#allocation3], 1
    %64 = vsyncpa [#allocation4], 1

</llo_original>
